<compile_context>
chip_gen: v6e
topology: v6e:2x2x1
jax: 0.10.0
libtpu: 0.0.40
codegen_flags: <defaults>
</compile_context>

<pallas_src>
import functools

import jax
import jax.numpy as jnp
from jax.experimental import pallas as pl
from jax.experimental.pallas import tpu as pltpu


def _round_up(x: int, m: int) -> int:
    return ((x + m - 1) // m) * m


def _lane_pad(d: int) -> int:
    # Block shapes are legal if the lane dim is a multiple of 128 OR equals
    # the full array dim.  Tiny dims stay unpadded; big non-multiples round up.
    return d if (d <= 128 or d % 128 == 0) else _round_up(d, 128)


def _choose_batch_tile(batch: int) -> tuple[int, int]:
    """Return (tile, padded_batch).

    Tiles are sublane-aligned (multiple of 8).  Whenever the batch allows it
    we guarantee >= 2 grid steps so 'parallel' semantics can shard across
    v7x's two TensorCores, and cap tiles at 256 rows for the 256x256 MXUs.
    """
    b8 = _round_up(batch, 8)
    if b8 <= 8:
        return b8, b8
    if b8 <= 512:
        tile = _round_up((b8 + 1) // 2, 8)
        return tile, _round_up(b8, tile)
    return 256, _round_up(b8, 256)


def _mlp_fused_kernel(*refs, n_hidden: int):
    x_ref, w_in_ref, b_in_ref = refs[:3]
    if n_hidden > 0:
        w_h_ref, b_h_ref, w_out_ref, b_out_ref, o_ref = refs[3:]
    else:
        w_out_ref, b_out_ref, o_ref = refs[3:]

    # Input layer: bf16 matmul on the MXU, f32 accumulate, f32 bias+ReLU.
    act = jnp.dot(x_ref[...], w_in_ref[...], preferred_element_type=jnp.float32)
    act = jnp.maximum(act + b_in_ref[...], 0.0)

    # Hidden layers: statically unrolled (small, trace-static); activations
    # never leave VMEM/vregs between layers.
    for i in range(n_hidden):
        act = jnp.dot(act.astype(jnp.bfloat16), w_h_ref[i],
                      preferred_element_type=jnp.float32)
        act = jnp.maximum(act + b_h_ref[i], 0.0)

    # Output layer: Linear only.
    y = jnp.dot(act.astype(jnp.bfloat16), w_out_ref[...],
                preferred_element_type=jnp.float32)
    o_ref[...] = (y + b_out_ref[...]).astype(o_ref.dtype)


def prepare_params(params):
    """One-time padding + bf16 cast of weights (hoisted out of the forward).

    Weights -> bf16 (MXU-native); biases stay f32 (added in f32 in-kernel).
    Zero padding is exact for Linear(+ReLU) chains.
    """
    w_in, b_in, w_h, b_h, w_out, b_out = params
    d_in, hidden = w_in.shape
    d_out = w_out.shape[1]
    n_hidden = w_h.shape[0]

    din_p = _lane_pad(d_in)
    h_p = _lane_pad(hidden)
    dout_p = _round_up(d_out, 128)   # lane-dense output stores

    bf16, f32 = jnp.bfloat16, jnp.float32
    w_in_p = jnp.pad(w_in, ((0, din_p - d_in), (0, h_p - hidden))).astype(bf16)
    b_in_p = jnp.pad(b_in, ((0, 0), (0, h_p - hidden))).astype(f32)
    w_out_p = jnp.pad(w_out, ((0, h_p - hidden), (0, dout_p - d_out))).astype(bf16)
    b_out_p = jnp.pad(b_out, ((0, 0), (0, dout_p - d_out))).astype(f32)
    if n_hidden > 0:
        w_h_p = jnp.pad(
            w_h, ((0, 0), (0, h_p - hidden), (0, h_p - hidden))).astype(bf16)
        b_h_p = jnp.pad(b_h, ((0, 0), (0, 0), (0, h_p - hidden))).astype(f32)
    else:
        w_h_p, b_h_p = None, None
    return (w_in_p, b_in_p, w_h_p, b_h_p, w_out_p, b_out_p)


@functools.partial(jax.jit, static_argnames=("out_dim",))
def mlp_forward(x, prepared, *, out_dim):
    """Fused MLP forward over pre-padded bf16 params from prepare_params."""
    w_in_p, b_in_p, w_h_p, b_h_p, w_out_p, b_out_p = prepared
    n_hidden = 0 if w_h_p is None else w_h_p.shape[0]

    B, d_in = x.shape
    din_p, h_p = w_in_p.shape
    dout_p = w_out_p.shape[1]

    TB, B_p = _choose_batch_tile(B)
    grid = (B_p // TB,)

    # Only x is padded/cast per call.
    xp = jnp.pad(x, ((0, B_p - B), (0, din_p - d_in))).astype(jnp.bfloat16)

    single = dict(pipeline_mode=pl.Buffered(1))   # grid-invariant -> 1 buffer
    in_specs = [
        pl.BlockSpec((TB, din_p), lambda i: (i, 0)),                    # x tile
        pl.BlockSpec((din_p, h_p), lambda i: (0, 0), **single),         # w_in
        pl.BlockSpec((1, h_p), lambda i: (0, 0), **single),             # b_in
    ]
    args = [xp, w_in_p, b_in_p]
    if n_hidden > 0:
        in_specs += [
            pl.BlockSpec((n_hidden, h_p, h_p), lambda i: (0, 0, 0), **single),
            pl.BlockSpec((n_hidden, 1, h_p), lambda i: (0, 0, 0), **single),
        ]
        args += [w_h_p, b_h_p]
    in_specs += [
        pl.BlockSpec((h_p, dout_p), lambda i: (0, 0), **single),        # w_out
        pl.BlockSpec((1, dout_p), lambda i: (0, 0), **single),          # b_out
    ]
    args += [w_out_p, b_out_p]

    # VMEM plan: single-buffered weight slab + double-buffered x/out tiles
    # + activation headroom.  Capped at 56 MiB (safe for v7x's 64 MiB/TC).
    weight_bytes = (w_in_p.size + w_out_p.size) * 2 + (b_in_p.size + b_out_p.size) * 4
    if n_hidden > 0:
        weight_bytes += w_h_p.size * 2 + b_h_p.size * 4
    act_bytes = TB * max(din_p, h_p, dout_p) * 4
    vmem_needed = (weight_bytes
                   + 2 * TB * din_p * 2      # x tile, bf16, 2 buffers
                   + 2 * TB * dout_p * 4     # out tile, f32, 2 buffers
                   + 4 * act_bytes)          # live activations / spill headroom
    vmem_limit = int(min(max(2 * vmem_needed, 16 << 20), 56 << 20))

    flops = 2 * B_p * (din_p * h_p + n_hidden * h_p * h_p + h_p * dout_p)
    bytes_accessed = xp.size * 2 + weight_bytes + B_p * dout_p * 4

    out_p = pl.pallas_call(
        functools.partial(_mlp_fused_kernel, n_hidden=n_hidden),
        out_shape=jax.ShapeDtypeStruct((B_p, dout_p), jnp.float32),
        grid=grid,
        in_specs=in_specs,
        out_specs=pl.BlockSpec((TB, dout_p), lambda i: (i, 0)),
        compiler_params=pltpu.CompilerParams(
            dimension_semantics=("parallel",),      # megacore sharding on v7x
            vmem_limit_bytes=vmem_limit,
        ),
        cost_estimate=pl.CostEstimate(
            flops=flops, transcendentals=0, bytes_accessed=bytes_accessed),
    )(*args)

    return out_p[:B, :out_dim]


def init_mlp_params(key, n_layers, input_dim, hidden_dim, output_dim):
    """Deterministic init mimicking PyTorch nn.Linear defaults (uniform in
    [-1/sqrt(fan_in), 1/sqrt(fan_in)]).  Weights stored (in, out); hidden
    weights/biases stacked along a leading layer axis.  Kept in f32; cast to
    bf16 once in prepare_params."""
    def lin(key, fan_in, fan_out):
        kw, kb = jax.random.split(key)
        bound = 1.0 / jnp.sqrt(float(fan_in))
        w = jax.random.uniform(kw, (fan_in, fan_out), jnp.float32, -bound, bound)
        b = jax.random.uniform(kb, (1, fan_out), jnp.float32, -bound, bound)
        return w, b

    keys = jax.random.split(key, n_layers + 1)
    w_in, b_in = lin(keys[0], input_dim, hidden_dim)
    hw, hb = [], []
    for i in range(n_layers - 1):
        w, b = lin(keys[1 + i], hidden_dim, hidden_dim)
        hw.append(w)
        hb.append(b)
    if hw:
        w_h = jnp.stack(hw)                       # (n_layers-1, H, H)
        b_h = jnp.stack(hb)                       # (n_layers-1, 1, H)
    else:
        w_h = jnp.zeros((0, hidden_dim, hidden_dim), jnp.float32)
        b_h = jnp.zeros((0, 1, hidden_dim), jnp.float32)
    w_out, b_out = lin(keys[-1], hidden_dim, output_dim)
    return (w_in, b_in, w_h, b_h, w_out, b_out)


if __name__ == "__main__":
    n_layers, input_dim, hidden_dim, output_dim = 3, 16, 32, 8
    batch = 8

    key = jax.random.PRNGKey(0)
    key, kx = jax.random.split(key)
    x = jax.random.normal(kx, (batch, input_dim), jnp.float32)

    params = init_mlp_params(key, n_layers, input_dim, hidden_dim, output_dim)
    prepared = prepare_params(params)     # one-time pad + bf16 cast (hoisted)

    out = mlp_forward(x, prepared, out_dim=output_dim)
    jax.block_until_ready(out)

    # Reference with the same numerics (bf16 operands, f32 accumulation).
    w_in, b_in, w_h, b_h, w_out, b_out = params
    bf = lambda a: a.astype(jnp.bfloat16)
    ref = jnp.maximum(
        jnp.dot(bf(x), bf(w_in), preferred_element_type=jnp.float32) + b_in, 0.0)
    for i in range(w_h.shape[0]):
        ref = jnp.maximum(
            jnp.dot(bf(ref), bf(w_h[i]), preferred_element_type=jnp.float32)
            + b_h[i], 0.0)
    ref = jnp.dot(bf(ref), bf(w_out), preferred_element_type=jnp.float32) + b_out

    assert out.shape == (batch, output_dim)
    assert jnp.allclose(out, ref, atol=2e-2, rtol=2e-2), float(
        jnp.max(jnp.abs(out - ref)))

    print("KERNEL_OK")
</pallas_src>

<mosaic_0001>
module attributes {stable_mosaic.version = 11 : i64} {
  func.func @_mlp_fused_kernel(%arg0: i32, %arg1: memref<8x16xbf16, #tpu.memory_space<vmem>>, %arg2: memref<16x32xbf16, #tpu.memory_space<vmem>>, %arg3: memref<1x32xf32, #tpu.memory_space<vmem>>, %arg4: memref<2x32x32xbf16, #tpu.memory_space<vmem>>, %arg5: memref<2x1x32xf32, #tpu.memory_space<vmem>>, %arg6: memref<32x128xbf16, #tpu.memory_space<vmem>>, %arg7: memref<1x128xf32, #tpu.memory_space<vmem>>, %arg8: memref<8x128xf32, #tpu.memory_space<vmem>>) attributes {dimension_semantics = [#tpu.dimension_semantics<parallel>], iteration_bounds = array<i64: 1>, scalar_prefetch = 0 : i64, scratch_operands = 0 : i64, tpu.core_type = #tpu.core_type<tc>, window_params = [{transform_indices = @transform_0, window_bounds = array<i64: 8, 16>}, {pipeline_mode = #tpu.pipeline_mode<synchronous>, transform_indices = @transform_1, window_bounds = array<i64: 16, 32>}, {pipeline_mode = #tpu.pipeline_mode<synchronous>, transform_indices = @transform_2, window_bounds = array<i64: 1, 32>}, {pipeline_mode = #tpu.pipeline_mode<synchronous>, transform_indices = @transform_3, window_bounds = array<i64: 2, 32, 32>}, {pipeline_mode = #tpu.pipeline_mode<synchronous>, transform_indices = @transform_4, window_bounds = array<i64: 2, 1, 32>}, {pipeline_mode = #tpu.pipeline_mode<synchronous>, transform_indices = @transform_5, window_bounds = array<i64: 32, 128>}, {pipeline_mode = #tpu.pipeline_mode<synchronous>, transform_indices = @transform_6, window_bounds = array<i64: 1, 128>}, {transform_indices = @transform_7, window_bounds = array<i64: 8, 128>}]} {
    %c0 = arith.constant 0 : index
    %c0_0 = arith.constant 0 : index
    %0 = vector.load %arg1[%c0, %c0_0] : memref<8x16xbf16, #tpu.memory_space<vmem>>, vector<8x16xbf16>
    %c0_1 = arith.constant 0 : index
    %c0_2 = arith.constant 0 : index
    %1 = vector.load %arg2[%c0_1, %c0_2] : memref<16x32xbf16, #tpu.memory_space<vmem>>, vector<16x32xbf16>
    %cst = arith.constant dense<0.000000e+00> : vector<8x32xf32>
    %2 = tpu.matmul %0, %1, %cst {dimension_numbers = #tpu.dot_dimension_numbers<[1], [0], [0], [1], [0, 0, 1, 1], [], []>} : vector<8x16xbf16>, vector<16x32xbf16>, vector<8x32xf32> -> vector<8x32xf32>
    %c0_3 = arith.constant 0 : index
    %c0_4 = arith.constant 0 : index
    %3 = vector.load %arg3[%c0_3, %c0_4] : memref<1x32xf32, #tpu.memory_space<vmem>>, vector<1x32xf32>
    %4 = vector.broadcast %3 : vector<1x32xf32> to vector<8x32xf32>
    %5 = arith.addf %2, %4 : vector<8x32xf32>
    %cst_5 = arith.constant 0.000000e+00 : f32
    %6 = vector.broadcast %cst_5 : f32 to vector<8x32xf32>
    %7 = arith.maximumf %5, %6 : vector<8x32xf32>
    %8 = arith.truncf %7 : vector<8x32xf32> to vector<8x32xbf16>
    %c0_6 = arith.constant 0 : index
    %c0_7 = arith.constant 0 : index
    %c0_8 = arith.constant 0 : index
    %9 = vector.load %arg4[%c0_6, %c0_7, %c0_8] : memref<2x32x32xbf16, #tpu.memory_space<vmem>>, vector<1x32x32xbf16>
    %10 = vector.shape_cast %9 : vector<1x32x32xbf16> to vector<32x32xbf16>
    %cst_9 = arith.constant dense<0.000000e+00> : vector<8x32xf32>
    %11 = tpu.matmul %8, %10, %cst_9 {dimension_numbers = #tpu.dot_dimension_numbers<[1], [0], [0], [1], [0, 0, 1, 1], [], []>} : vector<8x32xbf16>, vector<32x32xbf16>, vector<8x32xf32> -> vector<8x32xf32>
    %c0_10 = arith.constant 0 : index
    %c0_11 = arith.constant 0 : index
    %c0_12 = arith.constant 0 : index
    %12 = vector.load %arg5[%c0_10, %c0_11, %c0_12] : memref<2x1x32xf32, #tpu.memory_space<vmem>>, vector<1x1x32xf32>
    %13 = vector.shape_cast %12 : vector<1x1x32xf32> to vector<1x32xf32>
    %14 = vector.broadcast %13 : vector<1x32xf32> to vector<8x32xf32>
    %15 = arith.addf %11, %14 : vector<8x32xf32>
    %cst_13 = arith.constant 0.000000e+00 : f32
    %16 = vector.broadcast %cst_13 : f32 to vector<8x32xf32>
    %17 = arith.maximumf %15, %16 : vector<8x32xf32>
    %18 = arith.truncf %17 : vector<8x32xf32> to vector<8x32xbf16>
    %c1 = arith.constant 1 : index
    %c0_14 = arith.constant 0 : index
    %c0_15 = arith.constant 0 : index
    %19 = vector.load %arg4[%c1, %c0_14, %c0_15] : memref<2x32x32xbf16, #tpu.memory_space<vmem>>, vector<1x32x32xbf16>
    %20 = vector.shape_cast %19 : vector<1x32x32xbf16> to vector<32x32xbf16>
    %cst_16 = arith.constant dense<0.000000e+00> : vector<8x32xf32>
    %21 = tpu.matmul %18, %20, %cst_16 {dimension_numbers = #tpu.dot_dimension_numbers<[1], [0], [0], [1], [0, 0, 1, 1], [], []>} : vector<8x32xbf16>, vector<32x32xbf16>, vector<8x32xf32> -> vector<8x32xf32>
    %c1_17 = arith.constant 1 : index
    %c0_18 = arith.constant 0 : index
    %c0_19 = arith.constant 0 : index
    %22 = vector.load %arg5[%c1_17, %c0_18, %c0_19] : memref<2x1x32xf32, #tpu.memory_space<vmem>>, vector<1x1x32xf32>
    %23 = vector.shape_cast %22 : vector<1x1x32xf32> to vector<1x32xf32>
    %24 = vector.broadcast %23 : vector<1x32xf32> to vector<8x32xf32>
    %25 = arith.addf %21, %24 : vector<8x32xf32>
    %cst_20 = arith.constant 0.000000e+00 : f32
    %26 = vector.broadcast %cst_20 : f32 to vector<8x32xf32>
    %27 = arith.maximumf %25, %26 : vector<8x32xf32>
    %28 = arith.truncf %27 : vector<8x32xf32> to vector<8x32xbf16>
    %c0_21 = arith.constant 0 : index
    %c0_22 = arith.constant 0 : index
    %29 = vector.load %arg6[%c0_21, %c0_22] : memref<32x128xbf16, #tpu.memory_space<vmem>>, vector<32x128xbf16>
    %cst_23 = arith.constant dense<0.000000e+00> : vector<8x128xf32>
    %30 = tpu.matmul %28, %29, %cst_23 {dimension_numbers = #tpu.dot_dimension_numbers<[1], [0], [0], [1], [0, 0, 1, 1], [], []>} : vector<8x32xbf16>, vector<32x128xbf16>, vector<8x128xf32> -> vector<8x128xf32>
    %c0_24 = arith.constant 0 : index
    %c0_25 = arith.constant 0 : index
    %31 = vector.load %arg7[%c0_24, %c0_25] : memref<1x128xf32, #tpu.memory_space<vmem>>, vector<1x128xf32>
    %32 = vector.broadcast %31 : vector<1x128xf32> to vector<8x128xf32>
    %33 = arith.addf %30, %32 : vector<8x128xf32>
    %c0_26 = arith.constant 0 : index
    %c0_27 = arith.constant 0 : index
    %34 = vector.load %arg8[%c0_26, %c0_27] : memref<8x128xf32, #tpu.memory_space<vmem>>, vector<8x128xf32>
    tpu.vector_store %arg8[%c0_26, %c0_27], %33 {strides = array<i32>} : memref<8x128xf32, #tpu.memory_space<vmem>>, vector<8x128xf32>,
    return
  }
  func.func @transform_0(%arg0: i32) -> (i32, i32) {
    %c0_i32 = arith.constant 0 : i32
    %c0_i32_0 = arith.constant 0 : i32
    return %arg0, %c0_i32 : i32, i32
  }
  func.func @transform_1(%arg0: i32) -> (i32, i32) {
    %c0_i32 = arith.constant 0 : i32
    %c0_i32_0 = arith.constant 0 : i32
    %c0_i32_1 = arith.constant 0 : i32
    return %c0_i32, %c0_i32_0 : i32, i32
  }
  func.func @transform_2(%arg0: i32) -> (i32, i32) {
    %c0_i32 = arith.constant 0 : i32
    %c0_i32_0 = arith.constant 0 : i32
    %c0_i32_1 = arith.constant 0 : i32
    return %c0_i32, %c0_i32_0 : i32, i32
  }
  func.func @transform_3(%arg0: i32) -> (i32, i32, i32) {
    %c0_i32 = arith.constant 0 : i32
    %c0_i32_0 = arith.constant 0 : i32
    %c0_i32_1 = arith.constant 0 : i32
    %c0_i32_2 = arith.constant 0 : i32
    return %c0_i32, %c0_i32_0, %c0_i32_1 : i32, i32, i32
  }
  func.func @transform_4(%arg0: i32) -> (i32, i32, i32) {
    %c0_i32 = arith.constant 0 : i32
    %c0_i32_0 = arith.constant 0 : i32
    %c0_i32_1 = arith.constant 0 : i32
    %c0_i32_2 = arith.constant 0 : i32
    return %c0_i32, %c0_i32_0, %c0_i32_1 : i32, i32, i32
  }
  func.func @transform_5(%arg0: i32) -> (i32, i32) {
    %c0_i32 = arith.constant 0 : i32
    %c0_i32_0 = arith.constant 0 : i32
    %c0_i32_1 = arith.constant 0 : i32
    return %c0_i32, %c0_i32_0 : i32, i32
  }
  func.func @transform_6(%arg0: i32) -> (i32, i32) {
    %c0_i32 = arith.constant 0 : i32
    %c0_i32_0 = arith.constant 0 : i32
    %c0_i32_1 = arith.constant 0 : i32
    return %c0_i32, %c0_i32_0 : i32, i32
  }
  func.func @transform_7(%arg0: i32) -> (i32, i32) {
    %c0_i32 = arith.constant 0 : i32
    %c0_i32_0 = arith.constant 0 : i32
    return %arg0, %c0_i32 : i32, i32
  }
}

</mosaic_0001>

<llo_original>
// kernel: mlp_forward.1
$region0: #{mlp_forward.1}
  #allocation0 [shape = 'u32[]', space=smem, size = 0x4, offset = 0x4, fixed_abs, tag = 'smem constant byte address 0x4 - core index']
  #allocation1 [shape = 'u32[144,128]{1,0:T(1,128)}', space=vmem, size = 0x12000, scoped, tag = 'internal scratch']
  %s0 = inlined_call_operand.vmem [shape: bf16[8,16], index: 0, kind: input, shape index: {}]
  %s1 = inlined_call_operand.hbm [shape: bf16[16,32], index: 1, kind: input, shape index: {}]
  %s2 = inlined_call_operand.vmem [shape: f32[1,32], index: 2, kind: input, shape index: {}]
  %s3 = inlined_call_operand.hbm [shape: bf16[2,32,32], index: 3, kind: input, shape index: {}]
  %s4 = inlined_call_operand.vmem [shape: f32[2,1,32], index: 4, kind: input, shape index: {}]
  %s5 = inlined_call_operand.vmem [shape: bf16[32,128], index: 5, kind: input, shape index: {}]
  %s6 = inlined_call_operand.vmem [shape: f32[1,128], index: 6, kind: input, shape index: {}]
  %s7 = inlined_call_operand.hbm [shape: f32[8,128], index: 7, kind: output, shape index: {}]
  %s8 = sld [smem:[#allocation0]]
  $region46: #{mlp_forward.1} parent=0
    _
  %s10 = ssub.s32 1, %s8
  %s11 = scalar_select 0, %s10, %s8
  $region1: #{mlp_forward.1} parent=0
    #allocation2 [shape = 'u8[4096]{0}', space=vmem, size = 0x1000, scoped, tag = 'input window, operand 1, single buffered']
    #allocation3 [shape = 's32[1]{0}', space=sflag, size = 0x4, scoped, tag = 'scoped memory for mlp_forward.1']
    #allocation4 [shape = 's32[1]{0}', space=sflag, size = 0x4, scoped, tag = 'scoped memory for mlp_forward.1']
    #allocation5 [shape = 'u8[16384]{0}', space=vmem, size = 0x4000, scoped, tag = 'input window, operand 3, single buffered']
    #allocation6 [shape = 's32[1]{0}', space=sflag, size = 0x4, scoped, tag = 'scoped memory for mlp_forward.1']
    #allocation7 [shape = 'u8[4096]{0}', space=vmem, size = 0x1000, scoped, tag = 'output window, operand 0, single buffered']
    %12 = vsyncpa [#allocation3], 0
    %13 = vsyncpa [#allocation6], 0
    %14 = vsyncpa [#allocation4], 0
    // Predicated region
    $region2: #{mlp_forward.1} parent=1 // pred_check
      _
    $region3: #{mlp_forward.1} parent=1 // pred_check_branch
      %16 = sbr.rel (0) target = $region5
    $region4: #{mlp_forward.1} parent=1 // pred_region
      _
    $region5: #{mlp_forward.1} parent=1 // pred_fallthru
      _
    // Predicated region
    $region6: #{mlp_forward.1} parent=1 // pred_check
      _
    $region7: #{mlp_forward.1} parent=1 // pred_check_branch
      %18 = sbr.rel (0) target = $region9
    $region8: #{mlp_forward.1} parent=1 // pred_region
      %s20 = ssub.s32 128, 128
      %21 = vsyncadd [#allocation3], %s20
      %s22 = sshll.u32 [#allocation2], 4
      %s23 = int_to_ptr.vmem [resolvable:$true] %s22
      %28 = dma.hbm_to_vmem [thread:$0]  %s1, 128, %s23, [#allocation3], 64, 64, 4
    $region9: #{mlp_forward.1} parent=1 // pred_fallthru
      _
    // Predicated region
    $region10: #{mlp_forward.1} parent=1 // pred_check
      _
    $region11: #{mlp_forward.1} parent=1 // pred_check_branch
      %30 = sbr.rel (0) target = $region13
    $region12: #{mlp_forward.1} parent=1 // pred_region
      _
    $region13: #{mlp_forward.1} parent=1 // pred_fallthru
      _
    // Predicated region
    $region14: #{mlp_forward.1} parent=1 // pred_check
      _
    $region15: #{mlp_forward.1} parent=1 // pred_check_branch
      %32 = sbr.rel (0) target = $region17
    $region16: #{mlp_forward.1} parent=1 // pred_region
      %s34 = ssub.s32 512, 512
      %35 = vsyncadd [#allocation6], %s34
      %s36 = sshll.u32 [#allocation5], 4
      %s37 = int_to_ptr.vmem [resolvable:$true] %s36
      %42 = dma.hbm_to_vmem [thread:$0]  %s3, 512, %s37, [#allocation6], 64, 64, 4
    $region17: #{mlp_forward.1} parent=1 // pred_fallthru
      _
    // Predicated region
    $region18: #{mlp_forward.1} parent=1 // pred_check
      _
    $region19: #{mlp_forward.1} parent=1 // pred_check_branch
      %44 = sbr.rel (0) target = $region21
    $region20: #{mlp_forward.1} parent=1 // pred_region
      _
    $region21: #{mlp_forward.1} parent=1 // pred_fallthru
      _
    // Predicated region
    $region22: #{mlp_forward.1} parent=1 // pred_check
      _
    $region23: #{mlp_forward.1} parent=1 // pred_check_branch
      %46 = sbr.rel (0) target = $region25
    $region24: #{mlp_forward.1} parent=1 // pred_region
      _
    $region25: #{mlp_forward.1} parent=1 // pred_fallthru
      _
    // Predicated region
    $region26: #{mlp_forward.1} parent=1 // pred_check
      _
    $region27: #{mlp_forward.1} parent=1 // pred_check_branch
      %48 = sbr.rel (0) target = $region29
    $region28: #{mlp_forward.1} parent=1 // pred_region
      _
    $region29: #{mlp_forward.1} parent=1 // pred_fallthru
      _
    // Predicated region
    $region30: #{mlp_forward.1} parent=1 // pred_check
      _
    $region31: #{mlp_forward.1} parent=1 // pred_check_branch
      %50 = sbr.rel (0) target = $region33
    $region32: #{mlp_forward.1} parent=1 // pred_region
      %51 = dma.done [#allocation3], 128
    $region33: #{mlp_forward.1} parent=1 // pred_fallthru
      _
    // Predicated region
    $region34: #{mlp_forward.1} parent=1 // pred_check
      _
    $region35: #{mlp_forward.1} parent=1 // pred_check_branch
      %53 = sbr.rel (0) target = $region37
    $region36: #{mlp_forward.1} parent=1 // pred_region
      %54 = dma.done [#allocation6], 512
    $region37: #{mlp_forward.1} parent=1 // pred_fallthru
      _
    %v56 = vld [vmem:[%s0] sm:$0xf]
    %v57 = vld [vmem:[#allocation2] sm:$0xf]
    %v58 = vld [vmem:[#allocation2 + $0x4] sm:$0xf]
    %v59 = vld [vmem:[%s2] sm:$0x1]
    %v61 = vlaneseq
    %v62 = vshrl.u32 %v61, 7
    %v63 = vsub.s32 0, %v62
    %v64 = vrot.slane %v59, %v63
    %v68 = vunpack.c.l.b16 %v57
    %v69 = vunpack.c.l.b16 %v58
    %v70 = vpack.c.b16 %v69, %v68
    %vm72 = vcmask 130048
    %v74 = vsel %vm72, %v56, 0
    %76 = vmatprep.subr.bf16.mxu0 0
    %77 = vmatpush1.bf16.msra.mxu0 0
    %78 = vmatprep.subr.bf16.mxu0 0
    %79 = vmatpush1.bf16.msra.mxu0 0
    %80 = vmatprep.subr.bf16.mxu0 0
    %81 = vmatpush1.bf16.msra.mxu0 0
    %82 = vmatprep.subr.bf16.mxu0 0
    %83 = vmatpush1.bf16.msra.mxu0 0
    %84 = vmatprep.subr.bf16.mxu0 0
    %85 = vmatpush1.bf16.msra.mxu0 0
    %86 = vmatprep.subr.bf16.mxu0 0
    %87 = vmatpush1.bf16.msra.mxu0 0
    %88 = vmatprep.subr.bf16.mxu0 0
    %89 = vmatpush1.bf16.msra.mxu0 0
    %90 = vmatprep.subr.bf16.mxu0 0
    %91 = vmatpush1.bf16.msra.mxu0 %v70
    %92 = vmatprep.subr.bf16.mxu0 0
    %93 = vmatpush2.bf16.msra.mxu0 0
    %94 = vmatprep.subr.bf16.mxu0 0
    %95 = vmatpush2.bf16.msra.mxu0 0
    %96 = vmatprep.subr.bf16.mxu0 0
    %97 = vmatpush2.bf16.msra.mxu0 0
    %98 = vmatprep.subr.bf16.mxu0 0
    %99 = vmatpush2.bf16.msra.mxu0 0
    %100 = vmatprep.subr.bf16.mxu0 0
    %101 = vmatpush2.bf16.msra.mxu0 0
    %102 = vmatprep.subr.bf16.mxu0 0
    %103 = vmatpush2.bf16.msra.mxu0 0
    %104 = vmatprep.subr.bf16.mxu0 0
    %105 = vmatpush2.bf16.msra.mxu0 0
    %106 = vmatprep.subr.bf16.mxu0 0
    %107 = vmatpush2.bf16.msra.mxu0 0
    %108 = vmatprep.mubr.bf16.mxu0 0
    %109 = vmatmul.mubr.bf16.gmra.mxu0 %v74
    %v110 = vpop.f32.mrf.mxu0
    %v111 = vadd.f32 %v64, %v110
    %v112 = vpop.f32.mrf.mxu0
    %v113 = vpop.f32.mrf.mxu0
    %v114 = vpop.f32.mrf.mxu0
    %115 = vdwg.mxu0
    %v116 = vmax.f32 %v111, 0.0
    %v117 = vpack.c.bf16 %v116, %v116
    %v118 = vld [vmem:[#allocation5] sm:$0xf]
    %v119 = vld [vmem:[#allocation5 + $0x4] sm:$0xf]
    %v120 = vld [vmem:[#allocation5 + $0x8] sm:$0xf]
    %v121 = vld [vmem:[#allocation5 + $0xc] sm:$0xf]
    %v122 = vld [vmem:[%s4] sm:$0x1]
    %v124 = vlaneseq
    %v125 = vshrl.u32 %v124, 7
    %v126 = vsub.s32 0, %v125
    %v127 = vrot.slane %v122, %v126
    %v133 = vunpack.c.l.b16 %v118
    %v134 = vunpack.c.l.b16 %v119
    %v135 = vunpack.c.l.b16 %v120
    %v136 = vunpack.c.l.b16 %v121
    %v137 = vpack.c.b16 %v134, %v133
    %v138 = vpack.c.b16 %v136, %v135
    %vm141 = vcmask 261120
    %v143 = vsel %vm141, %v117, 0
    %145 = vmatprep.subr.bf16.mxu0 0
    %146 = vmatpush1.bf16.msra.mxu0 0
    %147 = vmatprep.subr.bf16.mxu0 0
    %148 = vmatpush1.bf16.msra.mxu0 0
    %149 = vmatprep.subr.bf16.mxu0 0
    %150 = vmatpush1.bf16.msra.mxu0 0
    %151 = vmatprep.subr.bf16.mxu0 0
    %152 = vmatpush1.bf16.msra.mxu0 0
    %153 = vmatprep.subr.bf16.mxu0 0
    %154 = vmatpush1.bf16.msra.mxu0 0
    %155 = vmatprep.subr.bf16.mxu0 0
    %156 = vmatpush1.bf16.msra.mxu0 0
    %157 = vmatprep.subr.bf16.mxu0 0
    %158 = vmatpush1.bf16.msra.mxu0 %v138
    %159 = vmatprep.subr.bf16.mxu0 0
    %160 = vmatpush1.bf16.msra.mxu0 %v137
    %161 = vmatprep.subr.bf16.mxu0 0
    %162 = vmatpush2.bf16.msra.mxu0 0
    %163 = vmatprep.subr.bf16.mxu0 0
    %164 = vmatpush2.bf16.msra.mxu0 0
    %165 = vmatprep.subr.bf16.mxu0 0
    %166 = vmatpush2.bf16.msra.mxu0 0
    %167 = vmatprep.subr.bf16.mxu0 0
    %168 = vmatpush2.bf16.msra.mxu0 0
    %169 = vmatprep.subr.bf16.mxu0 0
    %170 = vmatpush2.bf16.msra.mxu0 0
    %171 = vmatprep.subr.bf16.mxu0 0
    %172 = vmatpush2.bf16.msra.mxu0 0
    %173 = vmatprep.subr.bf16.mxu0 0
    %174 = vmatpush2.bf16.msra.mxu0 0
    %175 = vmatprep.subr.bf16.mxu0 0
    %176 = vmatpush2.bf16.msra.mxu0 0
    %177 = vmatprep.mubr.bf16.mxu0 0
    %178 = vmatmul.mubr.bf16.gmra.mxu0 %v143
    %v179 = vpop.f32.mrf.mxu0
    %v180 = vadd.f32 %v127, %v179
    %v181 = vpop.f32.mrf.mxu0
    %v182 = vpop.f32.mrf.mxu0
    %v183 = vpop.f32.mrf.mxu0
    %184 = vdwg.mxu0
    %v185 = vmax.f32 %v180, 0.0
    %v186 = vpack.c.bf16 %v185, %v185
    %s187 = scalar_lea.vmem [#allocation5], 16
    %v188 = vld [vmem:[%s187] sm:$0xf]
    %v189 = vld [vmem:[%s187 + $0x4] sm:$0xf]
    %v190 = vld [vmem:[%s187 + $0x8] sm:$0xf]
    %v191 = vld [vmem:[%s187 + $0xc] sm:$0xf]
    %s192 = scalar_lea.vmem %s4, 1
    %v193 = vld [vmem:[%s192] sm:$0x1]
    %v195 = vlaneseq
    %v196 = vshrl.u32 %v195, 7
    %v197 = vsub.s32 0, %v196
    %v198 = vrot.slane %v193, %v197
    %v204 = vunpack.c.l.b16 %v188
    %v205 = vunpack.c.l.b16 %v189
    %v206 = vunpack.c.l.b16 %v190
    %v207 = vunpack.c.l.b16 %v191
    %v208 = vpack.c.b16 %v205, %v204
    %v209 = vpack.c.b16 %v207, %v206
    %v213 = vsel %vm141, %v186, 0
    %215 = vmatprep.subr.bf16.mxu0 0
    %216 = vmatpush1.bf16.msra.mxu0 0
    %217 = vmatprep.subr.bf16.mxu0 0
    %218 = vmatpush1.bf16.msra.mxu0 0
    %219 = vmatprep.subr.bf16.mxu0 0
    %220 = vmatpush1.bf16.msra.mxu0 0
    %221 = vmatprep.subr.bf16.mxu0 0
    %222 = vmatpush1.bf16.msra.mxu0 0
    %223 = vmatprep.subr.bf16.mxu0 0
    %224 = vmatpush1.bf16.msra.mxu0 0
    %225 = vmatprep.subr.bf16.mxu0 0
    %226 = vmatpush1.bf16.msra.mxu0 0
    %227 = vmatprep.subr.bf16.mxu0 0
    %228 = vmatpush1.bf16.msra.mxu0 %v209
    %229 = vmatprep.subr.bf16.mxu0 0
    %230 = vmatpush1.bf16.msra.mxu0 %v208
    %231 = vmatprep.subr.bf16.mxu0 0
    %232 = vmatpush2.bf16.msra.mxu0 0
    %233 = vmatprep.subr.bf16.mxu0 0
    %234 = vmatpush2.bf16.msra.mxu0 0
    %235 = vmatprep.subr.bf16.mxu0 0
    %236 = vmatpush2.bf16.msra.mxu0 0
    %237 = vmatprep.subr.bf16.mxu0 0
    %238 = vmatpush2.bf16.msra.mxu0 0
    %239 = vmatprep.subr.bf16.mxu0 0
    %240 = vmatpush2.bf16.msra.mxu0 0
    %241 = vmatprep.subr.bf16.mxu0 0
    %242 = vmatpush2.bf16.msra.mxu0 0
    %243 = vmatprep.subr.bf16.mxu0 0
    %244 = vmatpush2.bf16.msra.mxu0 0
    %245 = vmatprep.subr.bf16.mxu0 0
    %246 = vmatpush2.bf16.msra.mxu0 0
    %247 = vmatprep.mubr.bf16.mxu0 0
    %248 = vmatmul.mubr.bf16.gmra.mxu0 %v213
    %v249 = vpop.f32.mrf.mxu0
    %v250 = vadd.f32 %v198, %v249
    %v251 = vpop.f32.mrf.mxu0
    %v252 = vpop.f32.mrf.mxu0
    %v253 = vpop.f32.mrf.mxu0
    %254 = vdwg.mxu0
    %v255 = vmax.f32 %v250, 0.0
    %v256 = vpack.c.bf16 %v255, %v255
    %v257 = vld [vmem:[%s5] sm:$0xf]
    %v258 = vld [vmem:[%s5 + $0x4] sm:$0xf]
    %v259 = vld [vmem:[%s5 + $0x8] sm:$0xf]
    %v260 = vld [vmem:[%s5 + $0xc] sm:$0xf]
    %v261 = vld [vmem:[%s6] sm:$0x1]
    %v263 = vlaneseq
    %v264 = vshrl.u32 %v263, 7
    %v265 = vsub.s32 0, %v264
    %v266 = vrot.slane %v261, %v265
    %v272 = vunpack.c.l.b16 %v257
    %v273 = vunpack.c.l.b16 %v258
    %v274 = vunpack.c.l.b16 %v259
    %v275 = vunpack.c.l.b16 %v260
    %v276 = vpack.c.b16 %v273, %v272
    %v277 = vpack.c.b16 %v275, %v274
    %v281 = vsel %vm141, %v256, 0
    %283 = vmatprep.subr.bf16.mxu0 0
    %284 = vmatpush1.bf16.msra.mxu0 0
    %285 = vmatprep.subr.bf16.mxu0 0
    %286 = vmatpush1.bf16.msra.mxu0 0
    %287 = vmatprep.subr.bf16.mxu0 0
    %288 = vmatpush1.bf16.msra.mxu0 0
    %289 = vmatprep.subr.bf16.mxu0 0
    %290 = vmatpush1.bf16.msra.mxu0 0
    %291 = vmatprep.subr.bf16.mxu0 0
    %292 = vmatpush1.bf16.msra.mxu0 0
    %293 = vmatprep.subr.bf16.mxu0 0
    %294 = vmatpush1.bf16.msra.mxu0 0
    %295 = vmatprep.subr.bf16.mxu0 0
    %296 = vmatpush1.bf16.msra.mxu0 %v277
    %297 = vmatprep.subr.bf16.mxu0 0
    %298 = vmatpush1.bf16.msra.mxu0 %v276
    %299 = vmatprep.subr.bf16.mxu0 0
    %300 = vmatpush2.bf16.msra.mxu0 0
    %301 = vmatprep.subr.bf16.mxu0 0
    %302 = vmatpush2.bf16.msra.mxu0 0
    %303 = vmatprep.subr.bf16.mxu0 0
    %304 = vmatpush2.bf16.msra.mxu0 0
    %305 = vmatprep.subr.bf16.mxu0 0
    %306 = vmatpush2.bf16.msra.mxu0 0
    %307 = vmatprep.subr.bf16.mxu0 0
    %308 = vmatpush2.bf16.msra.mxu0 0
    %309 = vmatprep.subr.bf16.mxu0 0
    %310 = vmatpush2.bf16.msra.mxu0 0
    %311 = vmatprep.subr.bf16.mxu0 0
    %312 = vmatpush2.bf16.msra.mxu0 0
    %313 = vmatprep.subr.bf16.mxu0 0
    %314 = vmatpush2.bf16.msra.mxu0 0
    %315 = vmatprep.mubr.bf16.mxu0 0
    %316 = vmatmul.mubr.bf16.gmra.mxu0 %v281
    %v317 = vpop.f32.mrf.mxu0
    %v318 = vadd.f32 %v266, %v317
    %v319 = vpop.f32.mrf.mxu0
    %v320 = vpop.f32.mrf.mxu0
    %v321 = vpop.f32.mrf.mxu0
    %322 = vdwg.mxu0
    %323 = vst [vmem:[#allocation7] sm:$0xff] %v318
    // Predicated region
    $region38: #{mlp_forward.1} parent=1 // pred_check
      _
    $region39: #{mlp_forward.1} parent=1 // pred_check_branch
      %325 = sbr.rel (0) target = $region41
    $region40: #{mlp_forward.1} parent=1 // pred_region
      %s327 = ssub.s32 128, 128
      %328 = vsyncadd [#allocation4], %s327
      %s330 = sshll.u32 [#allocation7], 4
      %s331 = int_to_ptr.vmem [resolvable:$true] %s330
      %333 = dma.vmem_to_hbm [thread:$0]  %s331, 128, %s7, [#allocation4]
    $region41: #{mlp_forward.1} parent=1 // pred_fallthru
      _
    // Predicated region
    $region42: #{mlp_forward.1} parent=1 // pred_check
      _
    $region43: #{mlp_forward.1} parent=1 // pred_check_branch
      %335 = sbr.rel (0) target = $region45
    $region44: #{mlp_forward.1} parent=1 // pred_region
      %336 = dma.done [#allocation4], 128
    $region45: #{mlp_forward.1} parent=1 // pred_fallthru
      _
    %337 = vsyncpa [#allocation3], 1
    %338 = vsyncpa [#allocation6], 1
    %339 = vsyncpa [#allocation4], 1

</llo_original>
